<compile_context>
chip_gen: v5e
topology: v5e:2x2
jax: 0.10.0
libtpu: 0.0.40
codegen_flags: <defaults>
</compile_context>

<pallas_src>
import functools
import math

import jax
import jax.numpy as jnp
from jax.experimental import pallas as pl
from jax.experimental.pallas import tpu as pltpu


def _round_up(x, m):
    return (x + m - 1) // m * m


def _physical_vmem_bytes():
    """Per-core VMEM capacity; conservative fallback is v7x's 64 MiB/TC."""
    try:
        return int(pltpu.get_tpu_info().vmem_capacity_bytes)
    except Exception:
        return 64 * 1024 * 1024


# ----------------------------------------------------------------------------- kernel

def time_embedding_kernel(t_ref, w1_ref, w2_ref, b_ref, out_ref, *, half_dim, emb_scale):
    """One batch tile of the TimeEmbedding forward.

    t_ref  : (TB, 1)   f32 timesteps (batch tile, pipelined over the grid)
    w1_ref : (2H, Cp)  fc1 weight (transposed, zero padded), VMEM resident
    w2_ref : (Cp, Cp)  fc2 weight (transposed, zero padded), VMEM resident
    b_ref  : (2, Cp)   row 0 = fc1 bias, row 1 = fc2 bias (f32, zero padded)
    out_ref: (TB, Cp)
    """
    H = half_dim
    t = t_ref[...]                                              # (TB, 1) f32

    # Sinusoidal embedding built fully in-register: lanes [0:H] = sin(t*f_k),
    # lanes [H:2H] = cos(t*f_k) = sin(t*f_k + pi/2).  A single transcendental over the
    # tile; no freqs DMA, no lane concatenate.
    lane = jax.lax.broadcasted_iota(jnp.int32, (1, 2 * H), 1)   # (1, 2H)
    k = jnp.where(lane < H, lane, lane - H).astype(jnp.float32)
    freqs = jnp.exp(k * (-emb_scale))                           # (1, 2H)  (EUP)
    phase = jnp.where(lane < H, 0.0, 0.5 * jnp.pi).astype(jnp.float32)
    emb = jnp.sin(t * freqs + phase)                            # (TB, 2H) f32

    b1 = b_ref[0:1, :]                                          # (1, Cp) static slices
    b2 = b_ref[1:2, :]

    # fc1 (+ bias) as a single MXU matmul, f32 accumulation, then SiLU in f32.
    h = jnp.dot(emb.astype(w1_ref.dtype), w1_ref[...],
                preferred_element_type=jnp.float32) + b1        # (TB, Cp)
    h = h * jax.nn.sigmoid(h)                                   # SiLU

    # fc2 (+ bias)
    out = jnp.dot(h.astype(w2_ref.dtype), w2_ref[...],
                  preferred_element_type=jnp.float32) + b2
    out_ref[...] = out.astype(out_ref.dtype)


# ----------------------------------------------------------------------- param packing

def init_params(key, n_channels):
    """Deterministic synthetic parameters matching the nn.Linear shapes."""
    in1 = n_channels // 4
    k1, k2, k3, k4 = jax.random.split(key, 4)
    # PyTorch nn.Linear stores weight as (out_features, in_features).
    w1 = jax.random.normal(k1, (n_channels, in1), jnp.float32) * 0.05
    b1 = jax.random.normal(k2, (n_channels,), jnp.float32) * 0.05
    w2 = jax.random.normal(k3, (n_channels, n_channels), jnp.float32) * 0.05
    b2 = jax.random.normal(k4, (n_channels,), jnp.float32) * 0.05
    return w1, b1, w2, b2


def pack_params(params, n_channels, *, weight_dtype=jnp.bfloat16, min_pallas_channels=128):
    """One-time packing of the nn.Linear parameters for the Pallas kernel.

    Call this at parameter-init / checkpoint-load time, NOT per forward step: it
    touches O(C^2) weight data (transpose + zero-pad + cast), which would otherwise
    dominate the per-step HBM traffic of this small kernel.

    weight_dtype=jnp.bfloat16 (default) halves the dominant weight DMA on v5e/v6e/v7x;
    the MXU takes bf16 natively and accumulation stays f32.  Pass jnp.float32 for the
    tight-tolerance path.
    """
    w1, b1, w2, b2 = params
    C = n_channels
    H = C // 8
    if H < 2:
        raise ValueError("n_channels must be >= 16 (half_dim - 1 must be > 0)")
    packed = {
        "C": C,
        "H": H,
        "emb_scale": math.log(10000.0) / (H - 1),
        "raw": params,                                # kept for the tiny-C XLA fallback
        "use_pallas": C >= min_pallas_channels,
    }
    if packed["use_pallas"]:
        Cp = _round_up(C, 128)                        # lane-dense hidden/output width
        # concat([sin, cos]) @ W1.T == emb_(B,2H) @ W1.T_(2H,C); zero padding keeps the
        # math exact (padded fc1 cols -> SiLU(0) = 0 -> contribute 0 to fc2).
        packed["Cp"] = Cp
        packed["w1t"] = (jnp.zeros((2 * H, Cp), jnp.float32)
                         .at[:, :C].set(w1.T).astype(weight_dtype))
        packed["w2t"] = (jnp.zeros((Cp, Cp), jnp.float32)
                         .at[:C, :C].set(w2.T).astype(weight_dtype))
        packed["bias"] = (jnp.zeros((2, Cp), jnp.float32)
                          .at[0, :C].set(b1)
                          .at[1, :C].set(b2))
    return packed


# ----------------------------------------------------------------------------- forward

def time_embedding(t, packed, *, batch_tile=None, out_dtype=jnp.float32):
    """Pallas-backed forward pass equivalent to TimeEmbedding.forward(t).

    `packed` comes from pack_params().  Set out_dtype=jnp.bfloat16 if the consumer of
    the embedding accepts bf16 (halves the streamed writeback per grid step).
    """
    C = packed["C"]
    if not packed["use_pallas"]:
        # Tiny C: padding to 128 lanes inflates w2 DMA / MXU work by (128/C)^2; a plain
        # XLA matmul is faster there.
        return time_embedding_xla(t, packed["raw"], C).astype(out_dtype)

    Cp, H = packed["Cp"], packed["H"]
    w1t, w2t, bias = packed["w1t"], packed["w2t"], packed["bias"]
    w_item = jnp.dtype(w1t.dtype).itemsize
    out_item = jnp.dtype(out_dtype).itemsize

    B = t.shape[0]
    if batch_tile is None:
        # Weight-DMA-bound (small B): one grid step, one TensorCore fetches the weights
        # exactly once (splitting across v7x's 2 TCs would double weight bytes).
        # Activation-dominated (large B): >=2 tiles so the t/out pipeline and the v7x
        # megacore have work to overlap; cap 512 rows (lane-dense writeback near the
        # HBM roofline, still well within VMEM with single-buffered bf16 weights).
        w_bytes = (2 * H * Cp + Cp * Cp) * w_item
        act_bytes = B * Cp * out_item
        if act_bytes > 2 * w_bytes:
            TB = min(_round_up(-(-B // 2), 8), 512)
        else:
            TB = min(_round_up(B, 8), 512)
    else:
        TB = batch_tile
    assert TB % 8 == 0, "batch_tile must be a multiple of 8"
    Bp = _round_up(B, TB)

    # Per-call glue is only the cheap (B,1) timestep padding; weights were packed once.
    t2 = jnp.zeros((Bp, 1), jnp.float32).at[:B, 0].set(t.astype(jnp.float32))

    kernel = functools.partial(time_embedding_kernel,
                               half_dim=H, emb_scale=packed["emb_scale"])

    # VMEM budget: single-buffered resident weights/bias + double-buffered t/out tiles,
    # clamped to physical per-core VMEM minus headroom (matters on v7x: 64 MiB/TC).
    est = ((2 * H * Cp + Cp * Cp) * w_item          # resident weights (one buffer)
           + 2 * Cp * 4                             # packed biases (f32)
           + 2 * (TB * 4 + TB * Cp * out_item))     # double-buffered t / out tiles
    vmem_limit = int(min(max(est + (4 << 20), 32 << 20),
                         _physical_vmem_bytes() - (2 << 20)))

    out = pl.pallas_call(
        kernel,
        out_shape=jax.ShapeDtypeStruct((Bp, Cp), out_dtype),
        grid=(Bp // TB,),
        in_specs=[
            # t: streamed / pipelined over the batch grid axis.
            pl.BlockSpec((TB, 1), lambda i: (i, 0)),
            # Weights & packed biases: whole-array VMEM residents (constant across the
            # grid -> one buffer, no double-buffering waste).
            pl.BlockSpec(memory_space=pltpu.MemorySpace.VMEM),
            pl.BlockSpec(memory_space=pltpu.MemorySpace.VMEM),
            pl.BlockSpec(memory_space=pltpu.MemorySpace.VMEM),
        ],
        out_specs=pl.BlockSpec((TB, Cp), lambda i: (i, 0)),
        compiler_params=pltpu.CompilerParams(
            dimension_semantics=("parallel",),      # batch tiles shard across TCs (v7x)
            vmem_limit_bytes=vmem_limit),
    )(t2, w1t, w2t, bias)

    return out[:B, :C]


def time_embedding_xla(t, params, n_channels):
    """Pure-JAX reference mirroring the PyTorch forward exactly (also the tiny-C path)."""
    w1, b1, w2, b2 = params
    H = n_channels // 8
    emb_scale = math.log(10000.0) / (H - 1)
    freqs = jnp.exp(jnp.arange(H, dtype=jnp.float32) * -emb_scale)
    emb = t.astype(jnp.float32)[:, None] * freqs[None, :]
    emb = jnp.concatenate([jnp.sin(emb), jnp.cos(emb)], axis=1)
    emb = emb.reshape(emb.shape[0], -1)
    h = emb @ w1.T + b1
    h = h * jax.nn.sigmoid(h)           # SiLU
    return h @ w2.T + b2


if __name__ == "__main__":
    n_channels = 128        # smallest lane-dense width: Pallas path runs unpadded
    batch = 6               # not a multiple of 8: exercises the batch-padding path

    key = jax.random.PRNGKey(0)
    k_param, k_t = jax.random.split(key)
    params = init_params(k_param, n_channels)
    t = jax.random.uniform(k_t, (batch,), jnp.float32, 0.0, 1000.0)

    ref = time_embedding_xla(t, params, n_channels)

    # f32 weights: tight check of the Pallas path.
    packed_f32 = pack_params(params, n_channels, weight_dtype=jnp.float32)
    out_f32 = jax.block_until_ready(time_embedding(t, packed_f32))
    assert out_f32.shape == (batch, n_channels)
    err_f32 = jnp.max(jnp.abs(out_f32 - ref))
    assert jnp.allclose(out_f32, ref, atol=1e-3, rtol=1e-3), f"f32 max abs err {err_f32}"

    # bf16 weights (default / production path): relaxed tolerance, f32 accumulation.
    packed_bf16 = pack_params(params, n_channels)
    out_bf16 = jax.block_until_ready(time_embedding(t, packed_bf16))
    err_bf16 = jnp.max(jnp.abs(out_bf16 - ref))
    assert jnp.allclose(out_bf16, ref, atol=2e-2, rtol=2e-2), f"bf16 max abs err {err_bf16}"

    # Tiny-C configs (C < 128) route to the plain-XLA fallback (padding to 128 lanes
    # would move and multiply mostly zeros).
    small_params = init_params(k_param, 32)
    out_small = jax.block_until_ready(time_embedding(t, pack_params(small_params, 32)))
    ref_small = time_embedding_xla(t, small_params, 32)
    assert jnp.allclose(out_small, ref_small, atol=1e-4, rtol=1e-4)

    print("KERNEL_OK")
</pallas_src>

<mosaic_0001>
module attributes {stable_mosaic.version = 11 : i64} {
  func.func @time_embedding_kernel(%arg0: i32, %arg1: memref<8x1xf32, #tpu.memory_space<vmem>>, %arg2: memref<32x128xf32, #tpu.memory_space<vmem>>, %arg3: memref<128x128xf32, #tpu.memory_space<vmem>>, %arg4: memref<2x128xf32, #tpu.memory_space<vmem>>, %arg5: memref<8x128xf32, #tpu.memory_space<vmem>>) attributes {dimension_semantics = [#tpu.dimension_semantics<parallel>], iteration_bounds = array<i64: 1>, scalar_prefetch = 0 : i64, scratch_operands = 0 : i64, tpu.core_type = #tpu.core_type<tc>, window_params = [{transform_indices = @transform_0, window_bounds = array<i64: 8, 1>}, {pipeline_mode = #tpu.pipeline_mode<synchronous>, transform_indices = @transform_1, window_bounds = array<i64: 32, 128>}, {pipeline_mode = #tpu.pipeline_mode<synchronous>, transform_indices = @transform_2, window_bounds = array<i64: 128, 128>}, {pipeline_mode = #tpu.pipeline_mode<synchronous>, transform_indices = @transform_3, window_bounds = array<i64: 2, 128>}, {transform_indices = @transform_4, window_bounds = array<i64: 8, 128>}]} {
    %c0 = arith.constant 0 : index
    %c0_0 = arith.constant 0 : index
    %0 = vector.load %arg1[%c0, %c0_0] : memref<8x1xf32, #tpu.memory_space<vmem>>, vector<8x1xf32>
    %1 = tpu.iota {dimensions = array<i32: 1>} : vector<1x32xi32>
    %c16_i32 = arith.constant 16 : i32
    %2 = vector.broadcast %c16_i32 : i32 to vector<1x32xi32>
    %3 = arith.cmpi slt, %1, %2 : vector<1x32xi32>
    %c16_i32_1 = arith.constant 16 : i32
    %4 = vector.broadcast %c16_i32_1 : i32 to vector<1x32xi32>
    %5 = arith.subi %1, %4 : vector<1x32xi32>
    %6 = arith.select %3, %1, %5 : vector<1x32xi1>, vector<1x32xi32>
    %7 = arith.sitofp %6 : vector<1x32xi32> to vector<1x32xf32>
    %cst = arith.constant -0.614022672 : f32
    %8 = vector.broadcast %cst : f32 to vector<1x32xf32>
    %9 = arith.mulf %7, %8 : vector<1x32xf32>
    %10 = math.exp %9 : vector<1x32xf32>
    %c16_i32_2 = arith.constant 16 : i32
    %11 = vector.broadcast %c16_i32_2 : i32 to vector<1x32xi32>
    %12 = arith.cmpi slt, %1, %11 : vector<1x32xi32>
    %cst_3 = arith.constant 0.000000e+00 : f32
    %cst_4 = arith.constant 1.57079637 : f32
    %13 = vector.broadcast %cst_3 : f32 to vector<1x32xf32>
    %14 = vector.broadcast %cst_4 : f32 to vector<1x32xf32>
    %15 = arith.select %12, %13, %14 : vector<1x32xi1>, vector<1x32xf32>
    %16 = vector.broadcast %0 : vector<8x1xf32> to vector<8x32xf32>
    %17 = vector.broadcast %10 : vector<1x32xf32> to vector<8x32xf32>
    %18 = arith.mulf %16, %17 : vector<8x32xf32>
    %19 = vector.broadcast %15 : vector<1x32xf32> to vector<8x32xf32>
    %20 = arith.addf %18, %19 : vector<8x32xf32>
    %21 = math.sin %20 : vector<8x32xf32>
    %c0_5 = arith.constant 0 : index
    %c0_6 = arith.constant 0 : index
    %22 = vector.load %arg4[%c0_5, %c0_6] : memref<2x128xf32, #tpu.memory_space<vmem>>, vector<1x128xf32>
    %c1 = arith.constant 1 : index
    %c0_7 = arith.constant 0 : index
    %23 = vector.load %arg4[%c1, %c0_7] : memref<2x128xf32, #tpu.memory_space<vmem>>, vector<1x128xf32>
    %c0_8 = arith.constant 0 : index
    %c0_9 = arith.constant 0 : index
    %24 = vector.load %arg2[%c0_8, %c0_9] : memref<32x128xf32, #tpu.memory_space<vmem>>, vector<32x128xf32>
    %cst_10 = arith.constant dense<0.000000e+00> : vector<8x128xf32>
    %25 = tpu.matmul %21, %24, %cst_10 {dimension_numbers = #tpu.dot_dimension_numbers<[1], [0], [0], [1], [0, 0, 1, 1], [], []>} : vector<8x32xf32>, vector<32x128xf32>, vector<8x128xf32> -> vector<8x128xf32>
    %26 = vector.broadcast %22 : vector<1x128xf32> to vector<8x128xf32>
    %27 = arith.addf %25, %26 : vector<8x128xf32>
    %28 = arith.negf %27 : vector<8x128xf32>
    %29 = math.exp %28 : vector<8x128xf32>
    %cst_11 = arith.constant 1.000000e+00 : f32
    %30 = vector.broadcast %cst_11 : f32 to vector<8x128xf32>
    %31 = arith.addf %30, %29 : vector<8x128xf32>
    %32 = arith.divf %30, %31 : vector<8x128xf32>
    %33 = arith.mulf %27, %32 : vector<8x128xf32>
    %c0_12 = arith.constant 0 : index
    %c0_13 = arith.constant 0 : index
    %34 = vector.load %arg3[%c0_12, %c0_13] : memref<128x128xf32, #tpu.memory_space<vmem>>, vector<128x128xf32>
    %cst_14 = arith.constant dense<0.000000e+00> : vector<8x128xf32>
    %35 = tpu.matmul %33, %34, %cst_14 {dimension_numbers = #tpu.dot_dimension_numbers<[1], [0], [0], [1], [0, 0, 1, 1], [], []>} : vector<8x128xf32>, vector<128x128xf32>, vector<8x128xf32> -> vector<8x128xf32>
    %36 = vector.broadcast %23 : vector<1x128xf32> to vector<8x128xf32>
    %37 = arith.addf %35, %36 : vector<8x128xf32>
    %c0_15 = arith.constant 0 : index
    %c0_16 = arith.constant 0 : index
    %38 = vector.load %arg5[%c0_15, %c0_16] : memref<8x128xf32, #tpu.memory_space<vmem>>, vector<8x128xf32>
    tpu.vector_store %arg5[%c0_15, %c0_16], %37 {strides = array<i32>} : memref<8x128xf32, #tpu.memory_space<vmem>>, vector<8x128xf32>,
    return
  }
  func.func @transform_0(%arg0: i32) -> (i32, i32) {
    %c0_i32 = arith.constant 0 : i32
    %c0_i32_0 = arith.constant 0 : i32
    return %arg0, %c0_i32 : i32, i32
  }
  func.func @transform_1(%arg0: i32) -> (i32, i32) {
    %c0_i32 = arith.constant 0 : i32
    %c0_i32_0 = arith.constant 0 : i32
    %c0_i32_1 = arith.constant 0 : i32
    return %c0_i32, %c0_i32_0 : i32, i32
  }
  func.func @transform_2(%arg0: i32) -> (i32, i32) {
    %c0_i32 = arith.constant 0 : i32
    %c0_i32_0 = arith.constant 0 : i32
    %c0_i32_1 = arith.constant 0 : i32
    return %c0_i32, %c0_i32_0 : i32, i32
  }
  func.func @transform_3(%arg0: i32) -> (i32, i32) {
    %c0_i32 = arith.constant 0 : i32
    %c0_i32_0 = arith.constant 0 : i32
    %c0_i32_1 = arith.constant 0 : i32
    return %c0_i32, %c0_i32_0 : i32, i32
  }
  func.func @transform_4(%arg0: i32) -> (i32, i32) {
    %c0_i32 = arith.constant 0 : i32
    %c0_i32_0 = arith.constant 0 : i32
    return %arg0, %c0_i32 : i32, i32
  }
}

</mosaic_0001>

<llo_original>
// kernel: tpu_custom_call.1
$region0: #{tpu_custom_call.1}
  #allocation0 [shape = 'u32[]', space=smem, size = 0x4, offset = 0x4, fixed_abs, tag = 'smem constant byte address 0x4 - core index']
  #allocation1 [shape = 'u32[72,128]{1,0:T(1,128)}', space=vmem, size = 0x9000, scoped, tag = 'internal scratch']
  %s0 = inlined_call_operand.vmem [shape: f32[8,1], index: 0, kind: input, shape index: {}]
  %s1 = inlined_call_operand.hbm [shape: f32[32,128], index: 1, kind: input, shape index: {}]
  %s2 = inlined_call_operand.hbm [shape: f32[128,128], index: 2, kind: input, shape index: {}]
  %s3 = inlined_call_operand.vmem [shape: f32[2,128], index: 3, kind: input, shape index: {}]
  %s4 = inlined_call_operand.hbm [shape: f32[8,128], index: 4, kind: output, shape index: {}]
  %s5 = sld [smem:[#allocation0]]
  $region34: #{tpu_custom_call.1} parent=0
    _
  %s7 = ssub.s32 1, %s5
  %s8 = scalar_select 0, %s7, %s5
  $region1: #{tpu_custom_call.1} parent=0
    #allocation2 [shape = 'u8[16384]{0}', space=vmem, size = 0x4000, scoped, tag = 'input window, operand 1, single buffered']
    #allocation3 [shape = 's32[1]{0}', space=sflag, size = 0x4, scoped, tag = 'scoped memory for tpu_custom_call.1']
    #allocation4 [shape = 's32[1]{0}', space=sflag, size = 0x4, scoped, tag = 'scoped memory for tpu_custom_call.1']
    #allocation5 [shape = 'u8[65536]{0}', space=vmem, size = 0x10000, scoped, tag = 'input window, operand 2, single buffered']
    #allocation6 [shape = 's32[1]{0}', space=sflag, size = 0x4, scoped, tag = 'scoped memory for tpu_custom_call.1']
    #allocation7 [shape = 'u8[4096]{0}', space=vmem, size = 0x1000, scoped, tag = 'output window, operand 0, single buffered']
    %9 = vsyncpa [#allocation3], 0
    %10 = vsyncpa [#allocation6], 0
    %11 = vsyncpa [#allocation4], 0
    // Predicated region
    $region2: #{tpu_custom_call.1} parent=1 // pred_check
      _
    $region3: #{tpu_custom_call.1} parent=1 // pred_check_branch
      %13 = sbr.rel (0) target = $region5
    $region4: #{tpu_custom_call.1} parent=1 // pred_region
      _
    $region5: #{tpu_custom_call.1} parent=1 // pred_fallthru
      _
    // Predicated region
    $region6: #{tpu_custom_call.1} parent=1 // pred_check
      _
    $region7: #{tpu_custom_call.1} parent=1 // pred_check_branch
      %15 = sbr.rel (0) target = $region9
    $region8: #{tpu_custom_call.1} parent=1 // pred_region
      %17 = vsyncadd [#allocation3], 0
      %s18 = sshll.u32 %s1, 4
      %s19 = int_to_ptr.hbm [resolvable:$true] %s18
      %s20 = sshll.u32 [#allocation2], 4
      %s21 = int_to_ptr.vmem [resolvable:$true] %s20
      %26 = dma.hbm_to_vmem [thread:$0]  %s19, 512, %s21, [#allocation3], 128, 128, 8
    $region9: #{tpu_custom_call.1} parent=1 // pred_fallthru
      _
    // Predicated region
    $region10: #{tpu_custom_call.1} parent=1 // pred_check
      _
    $region11: #{tpu_custom_call.1} parent=1 // pred_check_branch
      %28 = sbr.rel (0) target = $region13
    $region12: #{tpu_custom_call.1} parent=1 // pred_region
      %30 = vsyncadd [#allocation6], 0
      %s31 = sshll.u32 %s2, 4
      %s32 = int_to_ptr.hbm [resolvable:$true] %s31
      %s33 = sshll.u32 [#allocation5], 4
      %s34 = int_to_ptr.vmem [resolvable:$true] %s33
      %39 = dma.hbm_to_vmem [thread:$0]  %s32, 2048, %s34, [#allocation6], 128, 128, 8
    $region13: #{tpu_custom_call.1} parent=1 // pred_fallthru
      _
    // Predicated region
    $region14: #{tpu_custom_call.1} parent=1 // pred_check
      _
    $region15: #{tpu_custom_call.1} parent=1 // pred_check_branch
      %41 = sbr.rel (0) target = $region17
    $region16: #{tpu_custom_call.1} parent=1 // pred_region
      _
    $region17: #{tpu_custom_call.1} parent=1 // pred_fallthru
      _
    // Predicated region
    $region18: #{tpu_custom_call.1} parent=1 // pred_check
      _
    $region19: #{tpu_custom_call.1} parent=1 // pred_check_branch
      %43 = sbr.rel (0) target = $region21
    $region20: #{tpu_custom_call.1} parent=1 // pred_region
      %45 = dma.done [#allocation3], 512
    $region21: #{tpu_custom_call.1} parent=1 // pred_fallthru
      _
    // Predicated region
    $region22: #{tpu_custom_call.1} parent=1 // pred_check
      _
    $region23: #{tpu_custom_call.1} parent=1 // pred_check_branch
      %47 = sbr.rel (0) target = $region25
    $region24: #{tpu_custom_call.1} parent=1 // pred_region
      %49 = dma.done [#allocation6], 2048
    $region25: #{tpu_custom_call.1} parent=1 // pred_fallthru
      _
    %v50 = vld [vmem:[%s0] sm:$0xff]
    %v51 = vlaneseq
    %v52 = vand.u32 %v51, 127
    %vm53 = vcmp.lt.s32.totalorder %v52, 16
    %v54 = vsub.s32 %v52, 16
    %v55 = vsel %vm53, %v52, %v54
    %v56 = vcvt.s32.f32 %v55
    %v57 = vmul.f32 %v56, -0.6140227
    %v58 = vmul.f32 %v57, 1.442695
    %v59 = vpow.pop %v58
    %v60 = vsel %vm53, 0.0, 1.5707964
    %62 = vset.pattern.permute.xlu0 0
    %63 = vperm.xlu0 %62, %v50
    %v64 = vpop.permute.xlu0 %63
    %v66 = vmul.f32 %v64, %v59
    %v67 = vadd.f32 %v66, %v60
    %v68 = vand.u32 2147483647, %v67
    %vm69 = vcmp.le.f32.partialorder %v68, 0.7853982
    %vm70 = vcmp.lt.s32.totalorder %v67, 0
    %v71 = vand.u32 %v67, 2139095040
    %v72 = vshrl.u32 %v71, 23
    %v73 = vsub.s32 %v72, 127
    %v74 = vand.u32 2147483647, %v67
    %v75 = vand.u32 %v74, 8388607
    %v76 = vor.u32 %v75, 8388608
    %v77 = vsub.s32 0, %v76
    %v78 = vadd.s32 %v73, 1
    %vm79 = vcmp.gt.s32.totalorder %v78, 0
    %v80 = vsel %vm79, %v78, 0
    %v81 = vshrl.u32 %v80, 5
    %v82 = vand.u32 %v80, 31
    %v83 = vsub.s32 32, %v82
    %v84 = vshrl.u32 683565275, %v83
    %v85 = vshll.u32 683565275, %v82
    %v86 = vshrl.u32 2475754826, %v83
    %v87 = vor.u32 %v85, %v86
    %v88 = vshll.u32 2475754826, %v82
    %v89 = vshrl.u32 2131351028, %v83
    %v90 = vor.u32 %v88, %v89
    %v91 = vshll.u32 2131351028, %v82
    %v92 = vshrl.u32 2102212464, %v83
    %v93 = vor.u32 %v91, %v92
    %v94 = vshll.u32 2102212464, %v82
    %v95 = vshrl.u32 920167782, %v83
    %v96 = vor.u32 %v94, %v95
    %v97 = vshll.u32 920167782, %v82
    %v98 = vshrl.u32 1326507024, %v83
    %v99 = vor.u32 %v97, %v98
    %vm100 = vcmp.lt.s32.totalorder %v81, 1
    %vm101 = vcmp.lt.s32.totalorder %v81, 2
    %vm102 = vcmp.lt.s32.totalorder %v81, 3
    %vm103 = vcmp.lt.s32.totalorder %v81, 4
    %v104 = vsel %vm100, %v84, %v87
    %v105 = vsel %vm103, %v93, 2102212464
    %v106 = vsel %vm102, %v90, %v105
    %v107 = vsel %vm101, %v104, %v106
    %v108 = vsel %vm100, %v87, %v90
    %v109 = vsel %vm103, %v96, 920167782
    %v110 = vsel %vm102, %v93, %v109
    %v111 = vsel %vm101, %v108, %v110
    %v112 = vsel %vm100, %v90, %v93
    %v113 = vsel %vm103, %v99, 1326507024
    %v114 = vsel %vm102, %v96, %v113
    %v115 = vsel %vm101, %v112, %v114
    %v116 = vshll.u32 %v76, 8
    %v117 = vand.u32 %v116, 65535
    %v118 = vshrl.u32 %v116, 16
    %v119 = vand.u32 %v115, 65535
    %v120 = vshrl.u32 %v115, 16
    %v121 = vmul.u32 %v117, %v119
    %v122 = vmul.u32 %v117, %v120
    %v123 = vmul.u32 %v118, %v119
    %v124 = vmul.u32 %v118, %v120
    %v125 = vshll.u32 %v122, 16
    %v126 = vshrl.u32 %v122, 16
    %v127 = vshll.u32 %v123, 16
    %v128 = vshrl.u32 %v123, 16
    %vm129 = vc.u32 %v121, %v125
    %v130 = vsel %vm129, 1, 0
    %v131 = vadd.s32 %v121, %v125
    %v132 = vadd.s32 %v124, %v130
    %vm133 = vc.u32 %v131, %v127
    %v134 = vsel %vm133, 1, 0
    %v135 = vadd.s32 %v131, %v127
    %v136 = vadd.s32 %v132, %v134
    %v137 = vadd.s32 %v136, %v126
    %v138 = vadd.s32 %v137, %v128
    %v139 = vand.u32 %v116, 65535
    %v140 = vshrl.u32 %v116, 16
    %v141 = vand.u32 %v111, 65535
    %v142 = vshrl.u32 %v111, 16
    %v143 = vmul.u32 %v139, %v141
    %v144 = vmul.u32 %v139, %v142
    %v145 = vmul.u32 %v140, %v141
    %v146 = vmul.u32 %v140, %v142
    %v147 = vshll.u32 %v144, 16
    %v148 = vshrl.u32 %v144, 16
    %v149 = vshll.u32 %v145, 16
    %v150 = vshrl.u32 %v145, 16
    %vm151 = vc.u32 %v143, %v147
    %v152 = vsel %vm151, 1, 0
    %v153 = vadd.s32 %v143, %v147
    %v154 = vadd.s32 %v146, %v152
    %vm155 = vc.u32 %v153, %v149
    %v156 = vsel %vm155, 1, 0
    %v157 = vadd.s32 %v153, %v149
    %v158 = vadd.s32 %v154, %v156
    %v159 = vadd.s32 %v158, %v148
    %v160 = vadd.s32 %v159, %v150
    %v161 = vmul.u32 %v116, %v107
    %v162 = vadd.s32 %v138, %v157
    %vm163 = vc.u32 %v138, %v157
    %v164 = vadd.s32 %v160, 1
    %v165 = vsel %vm163, %v164, %v160
    %v166 = vadd.s32 %v161, %v165
    %v167 = vadd.s32 %v166, 536870912
    %v168 = vshrl.u32 %v167, 30
    %v169 = vshll.u32 %v168, 30
    %v170 = vsub.s32 %v166, %v169
    %vm171 = vcmp.lt.s32.totalorder %v170, 0
    %v172 = vsub.s32 0, %v170
    %v173 = vsel %vm171, %v172, %v170
    %v174 = vclz %v173
    %v175 = vsub.s32 %v174, 2
    %vm176 = vcmp.gt.s32.totalorder 0, %v175
    %v177 = vsel %vm176, 0, %v175
    %v178 = vsub.s32 32, %v177
    %v179 = vshll.u32 %v170, %v177
    %v180 = vshrl.u32 %v162, %v178
    %v181 = vor.u32 %v179, %v180
    %v182 = vsub.s32 4294967266, %v177
    %v183 = vadd.s32 %v182, 127
    %v184 = vshll.u32 %v183, 23
    %v185 = vor.u32 4788187, %v184
    %v186 = vand.u32 2147483647, %v185
    %v188 = vcvt.s32.f32 %v181
    %v189 = vmul.f32 %v188, %v186
    %v190 = vxor.u32 %v189, 2147483648
    %v191 = vsel %vm70, %v190, %v189
    %v192 = vsub.s32 4, %v168
    %v193 = vsel %vm70, %v192, %v168
    %v194 = vsel %vm69, %v67, %v191
    %v195 = vsel %vm69, 0, %v193
    %v196 = vmul.f32 %v194, %v194
    %v197 = vmul.f32 %v196, -0.001358992
    %v198 = vadd.f32 %v197, 0.041655596
    %v199 = vmul.f32 %v196, %v198
    %v200 = vadd.f32 %v199, -0.4999988
    %v201 = vmul.f32 %v196, %v200
    %v202 = vadd.f32 1.0, %v201
    %v203 = vmul.f32 %v194, %v194
    %v204 = vmul.f32 %v203, -0.00019511016
    %v205 = vadd.f32 %v204, 0.008332121
    %v206 = vmul.f32 %v203, %v205
    %v207 = vadd.f32 %v206, -0.16666654
    %v208 = vmul.f32 %v203, %v207
    %v209 = vadd.f32 %v208, 1.0
    %v210 = vmul.f32 %v209, %v194
    %vm211 = vweird.f32 %v67
    %v212 = vadd.s32 %v195, 3
    %v213 = vand.u32 %v212, 3
    %vm214 = vcmp.lt.s32.totalorder %v213, 2
    %vm215 = vcmp.eq.s32.totalorder %v213, 0
    %v216 = vxor.u32 %v210, 2147483648
    %v217 = vsel %vm215, %v202, %v216
    %vm218 = vcmp.eq.s32.totalorder %v213, 2
    %v219 = vxor.u32 %v202, 2147483648
    %v220 = vsel %vm218, %v219, %v210
    %v221 = vsel %vm214, %v217, %v220
    %v222 = vsel %vm211, nan, %v221
    %v223 = vld [vmem:[%s3] sm:$0x1]
    %v224 = vld [vmem:[%s3 + $0x1] sm:$0x1]
    %v225 = vld [vmem:[#allocation2] sm:$0xff]
    %v226 = vld [vmem:[#allocation2 + $0x8] sm:$0xff]
    %v227 = vld [vmem:[#allocation2 + $0x10] sm:$0xff]
    %v228 = vld [vmem:[#allocation2 + $0x18] sm:$0xff]
    %v229 = vperm.slane %v223, 0
    %vm230 = vcmask 261120
    %v232 = vsel %vm230, %v222, 0
    %234 = vmatpush.msra.mxu0 0.0
    %235 = vmatpush.msra.mxu0 0.0
    %236 = vmatpush.msra.mxu0 0.0
    %237 = vmatpush.msra.mxu0 0.0
    %238 = vmatpush.msra.mxu0 0.0
    %239 = vmatpush.msra.mxu0 0.0
    %240 = vmatpush.msra.mxu0 0.0
    %241 = vmatpush.msra.mxu0 0.0
    %242 = vmatpush.msra.mxu0 0.0
    %243 = vmatpush.msra.mxu0 0.0
    %244 = vmatpush.msra.mxu0 0.0
    %245 = vmatpush.msra.mxu0 0.0
    %246 = vmatpush.msra.mxu0 %v228
    %247 = vmatpush.msra.mxu0 %v227
    %248 = vmatpush.msra.mxu0 %v226
    %249 = vmatpush.msra.mxu0 %v225
    %250 = vmatmul.f32.gmra.mxu0 %v232
    %v251 = vpop.f32.mrf.mxu0
    %v252 = vadd.f32 %v229, %v251
    %253 = vdwg.mxu0
    %v254 = vxor.u32 %v252, 2147483648
    %v255 = vmul.f32 %v254, 1.442695
    %v256 = vpow.pop %v255
    %v257 = vadd.f32 %v256, 1.0
    %v258 = vrcp.pop %v257
    %v259 = vmul.f32 %v257, %v258
    %v260 = vsub.f32 1.0, %v259
    %v261 = vmul.f32 %v258, %v260
    %v262 = vadd.f32 %v258, %v261
    %vm263 = vweird.f32 %v257
    %vm264 = vweird.f32 %v258
    %vm265 = vmor %vm263, %vm264
    %v266 = vsel %vm265, %v258, %v262
    %v267 = vand.u32 2147483647, %v257
    %vm268 = vcmp.eq.f32.partialorder %v267, 8.507059e+37
    %v269 = vand.u32 %v257, 2147483648
    %v270 = vor.u32 1.1754944e-38, %v269
    %v271 = vsel %vm268, %v270, %v266
    %v272 = vmul.f32 1.0, %v271
    %v273 = vmul.f32 %v252, %v272
    %v274 = vld [vmem:[#allocation5] sm:$0xff]
    %v275 = vld [vmem:[#allocation5 + $0x8] sm:$0xff]
    %v276 = vld [vmem:[#allocation5 + $0x10] sm:$0xff]
    %v277 = vld [vmem:[#allocation5 + $0x18] sm:$0xff]
    %v278 = vld [vmem:[#allocation5 + $0x20] sm:$0xff]
    %v279 = vld [vmem:[#allocation5 + $0x28] sm:$0xff]
    %v280 = vld [vmem:[#allocation5 + $0x30] sm:$0xff]
    %v281 = vld [vmem:[#allocation5 + $0x38] sm:$0xff]
    %v282 = vld [vmem:[#allocation5 + $0x40] sm:$0xff]
    %v283 = vld [vmem:[#allocation5 + $0x48] sm:$0xff]
    %v284 = vld [vmem:[#allocation5 + $0x50] sm:$0xff]
    %v285 = vld [vmem:[#allocation5 + $0x58] sm:$0xff]
    %v286 = vld [vmem:[#allocation5 + $0x60] sm:$0xff]
    %v287 = vld [vmem:[#allocation5 + $0x68] sm:$0xff]
    %v288 = vld [vmem:[#allocation5 + $0x70] sm:$0xff]
    %v289 = vld [vmem:[#allocation5 + $0x78] sm:$0xff]
    %v290 = vperm.slane %v224, 0
    %291 = vmatpush.msra.mxu0 %v289
    %292 = vmatpush.msra.mxu0 %v288
    %293 = vmatpush.msra.mxu0 %v287
    %294 = vmatpush.msra.mxu0 %v286
    %295 = vmatpush.msra.mxu0 %v285
    %296 = vmatpush.msra.mxu0 %v284
    %297 = vmatpush.msra.mxu0 %v283
    %298 = vmatpush.msra.mxu0 %v282
    %299 = vmatpush.msra.mxu0 %v281
    %300 = vmatpush.msra.mxu0 %v280
    %301 = vmatpush.msra.mxu0 %v279
    %302 = vmatpush.msra.mxu0 %v278
    %303 = vmatpush.msra.mxu0 %v277
    %304 = vmatpush.msra.mxu0 %v276
    %305 = vmatpush.msra.mxu0 %v275
    %306 = vmatpush.msra.mxu0 %v274
    %307 = vmatmul.f32.gmra.mxu0 %v273
    %v308 = vpop.f32.mrf.mxu0
    %v309 = vadd.f32 %v290, %v308
    %310 = vdwg.mxu0
    %311 = vst [vmem:[#allocation7] sm:$0xff] %v309
    // Predicated region
    $region26: #{tpu_custom_call.1} parent=1 // pred_check
      _
    $region27: #{tpu_custom_call.1} parent=1 // pred_check_branch
      %313 = sbr.rel (0) target = $region29
    $region28: #{tpu_custom_call.1} parent=1 // pred_region
      %315 = vsyncadd [#allocation4], 0
      %s317 = sshll.u32 [#allocation7], 4
      %s318 = int_to_ptr.vmem [resolvable:$true] %s317
      %s319 = sshll.u32 %s4, 4
      %s320 = int_to_ptr.hbm [resolvable:$true] %s319
      %322 = dma.vmem_to_hbm [thread:$0]  %s318, 128, %s320, [#allocation4]
    $region29: #{tpu_custom_call.1} parent=1 // pred_fallthru
      _
    // Predicated region
    $region30: #{tpu_custom_call.1} parent=1 // pred_check
      _
    $region31: #{tpu_custom_call.1} parent=1 // pred_check_branch
      %324 = sbr.rel (0) target = $region33
    $region32: #{tpu_custom_call.1} parent=1 // pred_region
      %326 = dma.done [#allocation4], 128
    $region33: #{tpu_custom_call.1} parent=1 // pred_fallthru
      _
    %327 = vsyncpa [#allocation3], 1
    %328 = vsyncpa [#allocation6], 1
    %329 = vsyncpa [#allocation4], 1

</llo_original>
